<compile_context>
chip_gen: v7x
topology: tpu7x:2x2x1
jax: 0.10.0
libtpu: 0.0.40
codegen_flags: <defaults>
</compile_context>

<pallas_src>
import jax
import jax.numpy as jnp
from jax import lax
from jax.experimental import pallas as pl
from jax.experimental.pallas import tpu as pltpu

EPS = 1e-5


def _bn_adj_kernel(gz_ref, bz_ref, gx_ref, bx_ref, z_ref, x_ref, zo_ref, xo_ref):
    """Fused training-mode BatchNorm2d for zf and xf on one channel tile.

    Data refs are (N, C_tile, H*W); stats are exact per channel because the
    full batch+spatial extent of each channel lives inside this block.
    """

    def _bn(in_ref, g_ref, b_ref, o_ref):
        x = in_ref[...].astype(jnp.float32)                    # (N, Ct, HW)
        inv_n = 1.0 / (x.shape[0] * x.shape[2])
        # Lane (XLU) reduce over HW, then cheap vreg accumulate over N.
        s = jnp.sum(x, axis=-1, keepdims=True)                 # (N, Ct, 1)
        mean = jnp.sum(s, axis=0, keepdims=True) * inv_n       # (1, Ct, 1)
        centered = x - mean
        ss = jnp.sum(centered * centered, axis=-1, keepdims=True)
        var = jnp.sum(ss, axis=0, keepdims=True) * inv_n       # biased var
        scale = lax.rsqrt(var + EPS) * g_ref[...].astype(jnp.float32)
        bias = b_ref[...].astype(jnp.float32)
        o_ref[...] = (centered * scale + bias).astype(o_ref.dtype)

    _bn(z_ref, gz_ref, bz_ref, zo_ref)
    _bn(x_ref, gx_ref, bx_ref, xo_ref)


def _choose_c_tile(n, c, hw_z, hw_x, itemsize, budget_bytes=24 * 1024 * 1024):
    """Largest channel tile (multiple of 8 dividing C, or full C) within budget.

    Budget accounts for both tensors, input + output blocks, double-buffered.
    The (8,128) rule requires the second-to-last block dim to be a multiple of
    8 or the full dimension.
    """
    per_c = n * (hw_z + hw_x) * itemsize * 2 * 2   # in+out, 2x double-buffer
    if c <= 8 or c % 8 != 0:
        return c
    best = 8
    for t in range(8, c + 1, 8):
        if c % t == 0 and t * per_c <= budget_bytes:
            best = t
    return best


def bn_adj_forward(zf, xf, params):
    """Equivalent of BN_adj.forward(zf, xf) -> (BN_z(zf), BN_x(xf))."""
    n, c, hz, wz = zf.shape
    nx, cx, hx, wx = xf.shape
    assert n == nx and c == cx, "zf/xf must share batch and channel dims"
    hwz, hwx = hz * wz, hx * wx

    # Free reshapes (no data movement): NCHW -> (N, C, H*W).
    z3 = zf.reshape(n, c, hwz)
    x3 = xf.reshape(n, c, hwx)
    gz = params["bn_z_gamma"].reshape(1, c, 1).astype(jnp.float32)
    bz = params["bn_z_beta"].reshape(1, c, 1).astype(jnp.float32)
    gx = params["bn_x_gamma"].reshape(1, c, 1).astype(jnp.float32)
    bx = params["bn_x_beta"].reshape(1, c, 1).astype(jnp.float32)

    itemsize = jnp.dtype(zf.dtype).itemsize
    ct = _choose_c_tile(n, c, hwz, hwx, itemsize)
    grid = (c // ct,)

    # Explicit scoped-VMEM limit with headroom; stays within v7x's 64 MiB.
    need = ct * n * (hwz + hwx) * itemsize * 2 * 2 + 4 * ct * 4 * 4
    vmem_limit = int(min(128 * 1024 * 1024,
                         max(32 * 1024 * 1024, need + (4 << 20))))

    param_spec = pl.BlockSpec((1, ct, 1), lambda i: (0, i, 0))
    z_spec = pl.BlockSpec((n, ct, hwz), lambda i: (0, i, 0))
    x_spec = pl.BlockSpec((n, ct, hwx), lambda i: (0, i, 0))

    z_out, x_out = pl.pallas_call(
        _bn_adj_kernel,
        out_shape=(jax.ShapeDtypeStruct((n, c, hwz), zf.dtype),
                   jax.ShapeDtypeStruct((n, c, hwx), xf.dtype)),
        grid_spec=pl.GridSpec(
            grid=grid,
            in_specs=[param_spec, param_spec, param_spec, param_spec,
                      z_spec, x_spec],
            out_specs=(z_spec, x_spec),
        ),
        compiler_params=pltpu.CompilerParams(
            dimension_semantics=("parallel",),
            vmem_limit_bytes=vmem_limit,
        ),
    )(gz, bz, gx, bx, z3, x3)

    # Free reshapes back to NCHW.
    return z_out.reshape(n, c, hz, wz), x_out.reshape(n, c, hx, wx)


def _reference_bn_train(x_nchw, gamma, beta):
    """Pure-JAX reference matching torch.nn.BatchNorm2d in training mode."""
    mean = jnp.mean(x_nchw, axis=(0, 2, 3), keepdims=True)
    var = jnp.mean((x_nchw - mean) ** 2, axis=(0, 2, 3), keepdims=True)
    g = gamma.reshape(1, -1, 1, 1)
    b = beta.reshape(1, -1, 1, 1)
    return (x_nchw - mean) * lax.rsqrt(var + EPS) * g + b


if __name__ == "__main__":
    key = jax.random.PRNGKey(0)
    k_zf, k_xf, k_gz, k_bz, k_gx, k_bx = jax.random.split(key, 6)

    num_channel = 4
    # Template feature zf and (larger) search feature xf, both NCHW.
    zf = jax.random.normal(k_zf, (2, num_channel, 8, 8), dtype=jnp.float32)
    xf = jax.random.normal(k_xf, (2, num_channel, 16, 16), dtype=jnp.float32)

    # Synthetic BN affine parameters (randomized so the affine path is
    # actually exercised; PyTorch default would be gamma=1, beta=0).
    params = {
        "bn_z_gamma": jax.random.normal(k_gz, (num_channel,), jnp.float32) * 0.1 + 1.0,
        "bn_z_beta": jax.random.normal(k_bz, (num_channel,), jnp.float32) * 0.1,
        "bn_x_gamma": jax.random.normal(k_gx, (num_channel,), jnp.float32) * 0.1 + 1.0,
        "bn_x_beta": jax.random.normal(k_bx, (num_channel,), jnp.float32) * 0.1,
    }

    z_out, x_out = bn_adj_forward(zf, xf, params)
    jax.block_until_ready((z_out, x_out))

    # Correctness check against a pure-JAX reference of the PyTorch semantics.
    z_ref = _reference_bn_train(zf, params["bn_z_gamma"], params["bn_z_beta"])
    x_ref = _reference_bn_train(xf, params["bn_x_gamma"], params["bn_x_beta"])
    assert z_out.shape == zf.shape and x_out.shape == xf.shape
    assert jnp.allclose(z_out, z_ref, atol=1e-5, rtol=1e-5)
    assert jnp.allclose(x_out, x_ref, atol=1e-5, rtol=1e-5)

    print("KERNEL_OK")
</pallas_src>

<mosaic_0001>
module attributes {stable_mosaic.version = 11 : i64} {
  func.func @_bn_adj_kernel(%arg0: i32, %arg1: memref<1x4x1xf32, #tpu.memory_space<vmem>>, %arg2: memref<1x4x1xf32, #tpu.memory_space<vmem>>, %arg3: memref<1x4x1xf32, #tpu.memory_space<vmem>>, %arg4: memref<1x4x1xf32, #tpu.memory_space<vmem>>, %arg5: memref<2x4x64xf32, #tpu.memory_space<vmem>>, %arg6: memref<2x4x256xf32, #tpu.memory_space<vmem>>, %arg7: memref<2x4x64xf32, #tpu.memory_space<vmem>>, %arg8: memref<2x4x256xf32, #tpu.memory_space<vmem>>) attributes {dimension_semantics = [#tpu.dimension_semantics<parallel>], iteration_bounds = array<i64: 1>, scalar_prefetch = 0 : i64, scratch_operands = 0 : i64, tpu.core_type = #tpu.core_type<tc>, window_params = [{transform_indices = @transform_0, window_bounds = array<i64: 1, 4, 1>}, {transform_indices = @transform_1, window_bounds = array<i64: 1, 4, 1>}, {transform_indices = @transform_2, window_bounds = array<i64: 1, 4, 1>}, {transform_indices = @transform_3, window_bounds = array<i64: 1, 4, 1>}, {transform_indices = @transform_4, window_bounds = array<i64: 2, 4, 64>}, {transform_indices = @transform_5, window_bounds = array<i64: 2, 4, 256>}, {transform_indices = @transform_6, window_bounds = array<i64: 2, 4, 64>}, {transform_indices = @transform_7, window_bounds = array<i64: 2, 4, 256>}]} {
    %c0 = arith.constant 0 : index
    %c0_0 = arith.constant 0 : index
    %c0_1 = arith.constant 0 : index
    %0 = vector.load %arg5[%c0, %c0_0, %c0_1] : memref<2x4x64xf32, #tpu.memory_space<vmem>>, vector<2x4x64xf32>
    %cst = arith.constant dense<0.000000e+00> : vector<2x4xf32>
    %1 = vector.multi_reduction <add>, %0, %cst [2] : vector<2x4x64xf32> to vector<2x4xf32>
    %2 = vector.shape_cast %1 : vector<2x4xf32> to vector<2x4x1xf32>
    %cst_2 = arith.constant dense<0.000000e+00> : vector<4x1xf32>
    %3 = vector.multi_reduction <add>, %2, %cst_2 [0] : vector<2x4x1xf32> to vector<4x1xf32>
    %4 = vector.shape_cast %3 : vector<4x1xf32> to vector<1x4x1xf32>
    %cst_3 = arith.constant 7.812500e-03 : f32
    %5 = vector.broadcast %cst_3 : f32 to vector<1x4x1xf32>
    %6 = arith.mulf %4, %5 : vector<1x4x1xf32>
    %7 = vector.broadcast %6 : vector<1x4x1xf32> to vector<2x4x64xf32>
    %8 = arith.subf %0, %7 : vector<2x4x64xf32>
    %9 = arith.mulf %8, %8 : vector<2x4x64xf32>
    %cst_4 = arith.constant dense<0.000000e+00> : vector<2x4xf32>
    %10 = vector.multi_reduction <add>, %9, %cst_4 [2] : vector<2x4x64xf32> to vector<2x4xf32>
    %11 = vector.shape_cast %10 : vector<2x4xf32> to vector<2x4x1xf32>
    %cst_5 = arith.constant dense<0.000000e+00> : vector<4x1xf32>
    %12 = vector.multi_reduction <add>, %11, %cst_5 [0] : vector<2x4x1xf32> to vector<4x1xf32>
    %13 = vector.shape_cast %12 : vector<4x1xf32> to vector<1x4x1xf32>
    %cst_6 = arith.constant 7.812500e-03 : f32
    %14 = vector.broadcast %cst_6 : f32 to vector<1x4x1xf32>
    %15 = arith.mulf %13, %14 : vector<1x4x1xf32>
    %cst_7 = arith.constant 9.99999974E-6 : f32
    %16 = vector.broadcast %cst_7 : f32 to vector<1x4x1xf32>
    %17 = arith.addf %15, %16 : vector<1x4x1xf32>
    %18 = math.rsqrt %17 : vector<1x4x1xf32>
    %c0_8 = arith.constant 0 : index
    %c0_9 = arith.constant 0 : index
    %c0_10 = arith.constant 0 : index
    %19 = vector.load %arg1[%c0_8, %c0_9, %c0_10] : memref<1x4x1xf32, #tpu.memory_space<vmem>>, vector<1x4x1xf32>
    %20 = arith.mulf %18, %19 : vector<1x4x1xf32>
    %c0_11 = arith.constant 0 : index
    %c0_12 = arith.constant 0 : index
    %c0_13 = arith.constant 0 : index
    %21 = vector.load %arg2[%c0_11, %c0_12, %c0_13] : memref<1x4x1xf32, #tpu.memory_space<vmem>>, vector<1x4x1xf32>
    %22 = vector.broadcast %20 : vector<1x4x1xf32> to vector<2x4x64xf32>
    %23 = arith.mulf %8, %22 : vector<2x4x64xf32>
    %24 = vector.broadcast %21 : vector<1x4x1xf32> to vector<2x4x64xf32>
    %25 = arith.addf %23, %24 : vector<2x4x64xf32>
    %c0_14 = arith.constant 0 : index
    %c0_15 = arith.constant 0 : index
    %c0_16 = arith.constant 0 : index
    %26 = vector.load %arg7[%c0_14, %c0_15, %c0_16] : memref<2x4x64xf32, #tpu.memory_space<vmem>>, vector<2x4x64xf32>
    tpu.vector_store %arg7[%c0_14, %c0_15, %c0_16], %25 {strides = array<i32>} : memref<2x4x64xf32, #tpu.memory_space<vmem>>, vector<2x4x64xf32>,
    %c0_17 = arith.constant 0 : index
    %c0_18 = arith.constant 0 : index
    %c0_19 = arith.constant 0 : index
    %27 = vector.load %arg6[%c0_17, %c0_18, %c0_19] : memref<2x4x256xf32, #tpu.memory_space<vmem>>, vector<2x4x256xf32>
    %cst_20 = arith.constant dense<0.000000e+00> : vector<2x4xf32>
    %28 = vector.multi_reduction <add>, %27, %cst_20 [2] : vector<2x4x256xf32> to vector<2x4xf32>
    %29 = vector.shape_cast %28 : vector<2x4xf32> to vector<2x4x1xf32>
    %cst_21 = arith.constant dense<0.000000e+00> : vector<4x1xf32>
    %30 = vector.multi_reduction <add>, %29, %cst_21 [0] : vector<2x4x1xf32> to vector<4x1xf32>
    %31 = vector.shape_cast %30 : vector<4x1xf32> to vector<1x4x1xf32>
    %cst_22 = arith.constant 0.001953125 : f32
    %32 = vector.broadcast %cst_22 : f32 to vector<1x4x1xf32>
    %33 = arith.mulf %31, %32 : vector<1x4x1xf32>
    %34 = vector.broadcast %33 : vector<1x4x1xf32> to vector<2x4x256xf32>
    %35 = arith.subf %27, %34 : vector<2x4x256xf32>
    %36 = arith.mulf %35, %35 : vector<2x4x256xf32>
    %cst_23 = arith.constant dense<0.000000e+00> : vector<2x4xf32>
    %37 = vector.multi_reduction <add>, %36, %cst_23 [2] : vector<2x4x256xf32> to vector<2x4xf32>
    %38 = vector.shape_cast %37 : vector<2x4xf32> to vector<2x4x1xf32>
    %cst_24 = arith.constant dense<0.000000e+00> : vector<4x1xf32>
    %39 = vector.multi_reduction <add>, %38, %cst_24 [0] : vector<2x4x1xf32> to vector<4x1xf32>
    %40 = vector.shape_cast %39 : vector<4x1xf32> to vector<1x4x1xf32>
    %cst_25 = arith.constant 0.001953125 : f32
    %41 = vector.broadcast %cst_25 : f32 to vector<1x4x1xf32>
    %42 = arith.mulf %40, %41 : vector<1x4x1xf32>
    %cst_26 = arith.constant 9.99999974E-6 : f32
    %43 = vector.broadcast %cst_26 : f32 to vector<1x4x1xf32>
    %44 = arith.addf %42, %43 : vector<1x4x1xf32>
    %45 = math.rsqrt %44 : vector<1x4x1xf32>
    %c0_27 = arith.constant 0 : index
    %c0_28 = arith.constant 0 : index
    %c0_29 = arith.constant 0 : index
    %46 = vector.load %arg3[%c0_27, %c0_28, %c0_29] : memref<1x4x1xf32, #tpu.memory_space<vmem>>, vector<1x4x1xf32>
    %47 = arith.mulf %45, %46 : vector<1x4x1xf32>
    %c0_30 = arith.constant 0 : index
    %c0_31 = arith.constant 0 : index
    %c0_32 = arith.constant 0 : index
    %48 = vector.load %arg4[%c0_30, %c0_31, %c0_32] : memref<1x4x1xf32, #tpu.memory_space<vmem>>, vector<1x4x1xf32>
    %49 = vector.broadcast %47 : vector<1x4x1xf32> to vector<2x4x256xf32>
    %50 = arith.mulf %35, %49 : vector<2x4x256xf32>
    %51 = vector.broadcast %48 : vector<1x4x1xf32> to vector<2x4x256xf32>
    %52 = arith.addf %50, %51 : vector<2x4x256xf32>
    %c0_33 = arith.constant 0 : index
    %c0_34 = arith.constant 0 : index
    %c0_35 = arith.constant 0 : index
    %53 = vector.load %arg8[%c0_33, %c0_34, %c0_35] : memref<2x4x256xf32, #tpu.memory_space<vmem>>, vector<2x4x256xf32>
    tpu.vector_store %arg8[%c0_33, %c0_34, %c0_35], %52 {strides = array<i32>} : memref<2x4x256xf32, #tpu.memory_space<vmem>>, vector<2x4x256xf32>,
    return
  }
  func.func @transform_0(%arg0: i32) -> (i32, i32, i32) {
    %c0_i32 = arith.constant 0 : i32
    %c0_i32_0 = arith.constant 0 : i32
    %c0_i32_1 = arith.constant 0 : i32
    return %c0_i32, %arg0, %c0_i32_0 : i32, i32, i32
  }
  func.func @transform_1(%arg0: i32) -> (i32, i32, i32) {
    %c0_i32 = arith.constant 0 : i32
    %c0_i32_0 = arith.constant 0 : i32
    %c0_i32_1 = arith.constant 0 : i32
    return %c0_i32, %arg0, %c0_i32_0 : i32, i32, i32
  }
  func.func @transform_2(%arg0: i32) -> (i32, i32, i32) {
    %c0_i32 = arith.constant 0 : i32
    %c0_i32_0 = arith.constant 0 : i32
    %c0_i32_1 = arith.constant 0 : i32
    return %c0_i32, %arg0, %c0_i32_0 : i32, i32, i32
  }
  func.func @transform_3(%arg0: i32) -> (i32, i32, i32) {
    %c0_i32 = arith.constant 0 : i32
    %c0_i32_0 = arith.constant 0 : i32
    %c0_i32_1 = arith.constant 0 : i32
    return %c0_i32, %arg0, %c0_i32_0 : i32, i32, i32
  }
  func.func @transform_4(%arg0: i32) -> (i32, i32, i32) {
    %c0_i32 = arith.constant 0 : i32
    %c0_i32_0 = arith.constant 0 : i32
    %c0_i32_1 = arith.constant 0 : i32
    return %c0_i32, %arg0, %c0_i32_0 : i32, i32, i32
  }
  func.func @transform_5(%arg0: i32) -> (i32, i32, i32) {
    %c0_i32 = arith.constant 0 : i32
    %c0_i32_0 = arith.constant 0 : i32
    %c0_i32_1 = arith.constant 0 : i32
    return %c0_i32, %arg0, %c0_i32_0 : i32, i32, i32
  }
  func.func @transform_6(%arg0: i32) -> (i32, i32, i32) {
    %c0_i32 = arith.constant 0 : i32
    %c0_i32_0 = arith.constant 0 : i32
    %c0_i32_1 = arith.constant 0 : i32
    return %c0_i32, %arg0, %c0_i32_0 : i32, i32, i32
  }
  func.func @transform_7(%arg0: i32) -> (i32, i32, i32) {
    %c0_i32 = arith.constant 0 : i32
    %c0_i32_0 = arith.constant 0 : i32
    %c0_i32_1 = arith.constant 0 : i32
    return %c0_i32, %arg0, %c0_i32_0 : i32, i32, i32
  }
}

</mosaic_0001>

<llo_original>
// kernel: tpu_custom_call.1
$region0: #{tpu_custom_call.1}
  #allocation0 [shape = 'u32[]', space=smem, size = 0x4, offset = 0x4, fixed_abs, tag = 'smem constant byte address 0x4 - core index']
  #allocation1 [shape = 'u32[144,128]{1,0:T(1,128)}', space=vmem, size = 0x12000, scoped, tag = 'internal scratch']
  %s0 = inlined_call_operand.vmem [shape: f32[1,4,1], index: 0, kind: input, shape index: {}]
  %s1 = inlined_call_operand.vmem [shape: f32[1,4,1], index: 1, kind: input, shape index: {}]
  %s2 = inlined_call_operand.vmem [shape: f32[1,4,1], index: 2, kind: input, shape index: {}]
  %s3 = inlined_call_operand.vmem [shape: f32[1,4,1], index: 3, kind: input, shape index: {}]
  %s4 = inlined_call_operand.vmem [shape: f32[2,4,64], index: 4, kind: input, shape index: {}]
  %s5 = inlined_call_operand.vmem [shape: f32[2,4,256], index: 5, kind: input, shape index: {}]
  %s6 = inlined_call_operand.hbm [shape: f32[2,4,64], index: 6, kind: output, shape index: {0}]
  %s7 = inlined_call_operand.hbm [shape: f32[2,4,256], index: 7, kind: output, shape index: {1}]
  %8 = xla_tuple %s6, %s7
  %s9 = sld [smem:[#allocation0]]
  $region42: #{tpu_custom_call.1} parent=0
    _
  %s11 = ssub.s32 1, %s9
  %s12 = scalar_select 0, %s11, %s9
  $region1: #{tpu_custom_call.1} parent=0
    #allocation2 [shape = 'u8[4096]{0}', space=vmem, size = 0x1000, scoped, tag = 'output window, operand 0, single buffered']
    #allocation3 [shape = 's32[1]{0}', space=sflag, size = 0x4, scoped, tag = 'scoped memory for tpu_custom_call.1']
    #allocation4 [shape = 'u8[8192]{0}', space=vmem, size = 0x2000, scoped, tag = 'output window, operand 1, single buffered']
    #allocation5 [shape = 's32[1]{0}', space=sflag, size = 0x4, scoped, tag = 'scoped memory for tpu_custom_call.1']
    %13 = vsyncpa [#allocation3], 0
    %14 = vsyncpa [#allocation5], 0
    // Predicated region
    $region2: #{tpu_custom_call.1} parent=1 // pred_check
      _
    $region3: #{tpu_custom_call.1} parent=1 // pred_check_branch
      %16 = sbr.rel (0) target = $region5
    $region4: #{tpu_custom_call.1} parent=1 // pred_region
      _
    $region5: #{tpu_custom_call.1} parent=1 // pred_fallthru
      _
    // Predicated region
    $region6: #{tpu_custom_call.1} parent=1 // pred_check
      _
    $region7: #{tpu_custom_call.1} parent=1 // pred_check_branch
      %18 = sbr.rel (0) target = $region9
    $region8: #{tpu_custom_call.1} parent=1 // pred_region
      _
    $region9: #{tpu_custom_call.1} parent=1 // pred_fallthru
      _
    // Predicated region
    $region10: #{tpu_custom_call.1} parent=1 // pred_check
      _
    $region11: #{tpu_custom_call.1} parent=1 // pred_check_branch
      %20 = sbr.rel (0) target = $region13
    $region12: #{tpu_custom_call.1} parent=1 // pred_region
      _
    $region13: #{tpu_custom_call.1} parent=1 // pred_fallthru
      _
    // Predicated region
    $region14: #{tpu_custom_call.1} parent=1 // pred_check
      _
    $region15: #{tpu_custom_call.1} parent=1 // pred_check_branch
      %22 = sbr.rel (0) target = $region17
    $region16: #{tpu_custom_call.1} parent=1 // pred_region
      _
    $region17: #{tpu_custom_call.1} parent=1 // pred_fallthru
      _
    // Predicated region
    $region18: #{tpu_custom_call.1} parent=1 // pred_check
      _
    $region19: #{tpu_custom_call.1} parent=1 // pred_check_branch
      %24 = sbr.rel (0) target = $region21
    $region20: #{tpu_custom_call.1} parent=1 // pred_region
      _
    $region21: #{tpu_custom_call.1} parent=1 // pred_fallthru
      _
    // Predicated region
    $region22: #{tpu_custom_call.1} parent=1 // pred_check
      _
    $region23: #{tpu_custom_call.1} parent=1 // pred_check_branch
      %26 = sbr.rel (0) target = $region25
    $region24: #{tpu_custom_call.1} parent=1 // pred_region
      _
    $region25: #{tpu_custom_call.1} parent=1 // pred_fallthru
      _
    %v27 = vld [vmem:[%s4] sm:$0xf]
    %v28 = vld [vmem:[%s4 + $0x4] sm:$0xf]
    %vm29 = vcmask 519168
    %v30 = vsel %vm29, %v27, 0.0
    %31 = vadd.xlane.f32.xlu0 %v30
    %v32 = vpop.xlane.xlu0 %31
    %v33 = vsel %vm29, %v28, 0.0
    %34 = vadd.xlane.f32.xlu0 %v33
    %v35 = vpop.xlane.xlu0 %34
    %vm36 = vcmask 1043456
    %v37 = vsel %vm36, %v32, 0.0
    %v38 = vsel %vm36, %v35, 0.0
    %v39 = vadd.f32 %v37, %v38
    %v40 = vmul.f32 %v39, 0.0078125
    %v41 = vsub.f32 %v27, %v40
    %v42 = vsub.f32 %v28, %v40
    %v43 = vmul.f32 %v41, %v41
    %v44 = vmul.f32 %v42, %v42
    %v45 = vsel %vm29, %v43, 0.0
    %46 = vadd.xlane.f32.xlu0 %v45
    %v47 = vpop.xlane.xlu0 %46
    %v48 = vsel %vm29, %v44, 0.0
    %49 = vadd.xlane.f32.xlu0 %v48
    %v50 = vpop.xlane.xlu0 %49
    %v51 = vsel %vm36, %v47, 0.0
    %v52 = vsel %vm36, %v50, 0.0
    %v53 = vadd.f32 %v51, %v52
    %v54 = vmul.f32 %v53, 0.0078125
    %v55 = vadd.f32 %v54, 1e-05
    %v56 = vrsqrt.pop %v55
    %v57 = vld [vmem:[%s0] sm:$0xf]
    %v58 = vmul.f32 %v56, %v57
    %v59 = vld [vmem:[%s1] sm:$0xf]
    %61 = vset.pattern.permute.xlu0 0
    %62 = vperm.xlu0 %61, %v58
    %v63 = vpop.permute.xlu0 %62
    %v65 = vmul.f32 %v41, %v63
    %v66 = vmul.f32 %v42, %v63
    %68 = vset.pattern.permute.xlu0 0
    %69 = vperm.xlu0 %68, %v59
    %v70 = vpop.permute.xlu0 %69
    %v72 = vadd.f32 %v65, %v70
    %v73 = vadd.f32 %v66, %v70
    %74 = vst.msk [vmem:[#allocation2] sm:$0xf] %vm29, %v72
    %75 = vst.msk [vmem:[#allocation2 + $0x4] sm:$0xf] %vm29, %v73
    %v76 = vld [vmem:[%s5] sm:$0xff]
    %v77 = vld [vmem:[%s5 + $0x8] sm:$0xff]
    %v80 = vcombine.high %v76, %v76
    %v81 = vcombine.high %v77, %v77
    %v84 = vsel %vm36, %v76, 0.0
    %v85 = vsel %vm36, %v80, 0.0
    %v86 = vadd.f32 %v84, %v85
    %87 = vadd.xlane.f32.xlu0 %v86
    %v88 = vpop.xlane.xlu0 %87
    %v89 = vsel %vm36, %v77, 0.0
    %v90 = vsel %vm36, %v81, 0.0
    %v91 = vadd.f32 %v89, %v90
    %92 = vadd.xlane.f32.xlu0 %v91
    %v93 = vpop.xlane.xlu0 %92
    %v94 = vsel %vm36, %v88, 0.0
    %v95 = vsel %vm36, %v93, 0.0
    %v96 = vadd.f32 %v94, %v95
    %v97 = vmul.f32 %v96, 0.001953125
    %v100 = vunpack.c.l.s4 839922192
    %v101 = vunpack.c.0.s8 %v100
    %v102 = vlaneseq
    %v103 = vshrl.u32 %v102, 7
    %v104 = vsub.s32 %v101, %v103
    %v105 = vrot.slane %v97, %v104
    %v107 = vsub.f32 %v76, %v105
    %v108 = vsub.f32 %v77, %v105
    %v109 = vmul.f32 %v107, %v107
    %v110 = vmul.f32 %v108, %v108
    %v113 = vcombine.high %v109, %v109
    %v114 = vcombine.high %v110, %v110
    %v117 = vsel %vm36, %v109, 0.0
    %v118 = vsel %vm36, %v113, 0.0
    %v119 = vadd.f32 %v117, %v118
    %120 = vadd.xlane.f32.xlu0 %v119
    %v121 = vpop.xlane.xlu0 %120
    %v122 = vsel %vm36, %v110, 0.0
    %v123 = vsel %vm36, %v114, 0.0
    %v124 = vadd.f32 %v122, %v123
    %125 = vadd.xlane.f32.xlu0 %v124
    %v126 = vpop.xlane.xlu0 %125
    %v127 = vsel %vm36, %v121, 0.0
    %v128 = vsel %vm36, %v126, 0.0
    %v129 = vadd.f32 %v127, %v128
    %v130 = vmul.f32 %v129, 0.001953125
    %v131 = vadd.f32 %v130, 1e-05
    %v132 = vrsqrt.pop %v131
    %v133 = vld [vmem:[%s2] sm:$0xf]
    %v134 = vmul.f32 %v132, %v133
    %v135 = vld [vmem:[%s3] sm:$0xf]
    %137 = vset.pattern.permute.xlu0 0
    %138 = vperm.xlu0 %137, %v134
    %v139 = vpop.permute.xlu0 %138
    %v141 = vunpack.c.l.s4 839922192
    %v142 = vunpack.c.0.s8 %v141
    %v143 = vlaneseq
    %v144 = vshrl.u32 %v143, 7
    %v145 = vsub.s32 %v142, %v144
    %v146 = vrot.slane %v139, %v145
    %v148 = vmul.f32 %v107, %v146
    %v149 = vmul.f32 %v108, %v146
    %151 = vset.pattern.permute.xlu0 0
    %152 = vperm.xlu0 %151, %v135
    %v153 = vpop.permute.xlu0 %152
    %v155 = vunpack.c.l.s4 839922192
    %v156 = vunpack.c.0.s8 %v155
    %v157 = vlaneseq
    %v158 = vshrl.u32 %v157, 7
    %v159 = vsub.s32 %v156, %v158
    %v160 = vrot.slane %v153, %v159
    %v162 = vadd.f32 %v148, %v160
    %v163 = vadd.f32 %v149, %v160
    %164 = vst [vmem:[#allocation4] sm:$0xff] %v162
    %165 = vst [vmem:[#allocation4 + $0x8] sm:$0xff] %v163
    // Predicated region
    $region26: #{tpu_custom_call.1} parent=1 // pred_check
      _
    $region27: #{tpu_custom_call.1} parent=1 // pred_check_branch
      %167 = sbr.rel (0) target = $region29
    $region28: #{tpu_custom_call.1} parent=1 // pred_region
      %s169 = ssub.s32 128, 128
      %170 = vsyncadd [#allocation3], %s169
      %s171 = sshll.u32 [#allocation2], 4
      %s172 = int_to_ptr.vmem [resolvable:$true] %s171
      %177 = dma.vmem_to_hbm [thread:$0]  %s172, 128, %s6, [#allocation3], 64, 64, 4
    $region29: #{tpu_custom_call.1} parent=1 // pred_fallthru
      _
    // Predicated region
    $region30: #{tpu_custom_call.1} parent=1 // pred_check
      _
    $region31: #{tpu_custom_call.1} parent=1 // pred_check_branch
      %179 = sbr.rel (0) target = $region33
    $region32: #{tpu_custom_call.1} parent=1 // pred_region
      %s181 = ssub.s32 256, 256
      %182 = vsyncadd [#allocation5], %s181
      %s183 = sshll.u32 [#allocation4], 4
      %s184 = int_to_ptr.vmem [resolvable:$true] %s183
      %189 = dma.vmem_to_hbm [thread:$0]  %s184, 256, %s7, [#allocation5], 128, 128, 8
    $region33: #{tpu_custom_call.1} parent=1 // pred_fallthru
      _
    // Predicated region
    $region34: #{tpu_custom_call.1} parent=1 // pred_check
      _
    $region35: #{tpu_custom_call.1} parent=1 // pred_check_branch
      %191 = sbr.rel (0) target = $region37
    $region36: #{tpu_custom_call.1} parent=1 // pred_region
      %192 = dma.done [#allocation3], 128
    $region37: #{tpu_custom_call.1} parent=1 // pred_fallthru
      _
    // Predicated region
    $region38: #{tpu_custom_call.1} parent=1 // pred_check
      _
    $region39: #{tpu_custom_call.1} parent=1 // pred_check_branch
      %194 = sbr.rel (0) target = $region41
    $region40: #{tpu_custom_call.1} parent=1 // pred_region
      %195 = dma.done [#allocation5], 256
    $region41: #{tpu_custom_call.1} parent=1 // pred_fallthru
      _
    %196 = vsyncpa [#allocation3], 1
    %197 = vsyncpa [#allocation5], 1

</llo_original>
